<compile_context>
chip_gen: v5e
topology: v5e:2x2
jax: 0.10.0
libtpu: 0.0.40
codegen_flags: <defaults>
</compile_context>

<pallas_src>
import jax
import jax.numpy as jnp
from jax.experimental import pallas as pl
from jax.experimental.pallas import tpu as pltpu


_LANE = 128
_LANE_DENSE_COLS = 1024            # 8 vregs wide; multiple of 128 -> unmasked stores
_TARGET_BLOCK_BYTES = 2 * 1024 * 1024  # ~2 MiB per block: 4 double-buffered blocks
                                       # (in + out) stay well under v7x scoped VMEM.


def _identity_kernel(x_ref, o_ref):
    # The entire forward pass of _Hax: return x.
    o_ref[...] = x_ref[...]


def _sublane_multiple(dtype) -> int:
    """Packed sublane count: 8 for 4-byte, 16 for 2-byte, 32 for 1-byte dtypes."""
    itemsize = jnp.dtype(dtype).itemsize
    return max(8, 32 // max(1, itemsize))


def _round_up(a: int, b: int) -> int:
    return -(-a // b) * b


def _pallas_identity_copy(x: jax.Array) -> jax.Array:
    """Materialized identity: lane-dense, large-block HBM->HBM streaming copy."""
    orig_shape = x.shape
    dtype = x.dtype
    n = x.size
    if n == 0:
        return x

    flat = x.reshape(-1)
    itemsize = jnp.dtype(dtype).itemsize
    sub = _sublane_multiple(dtype)

    if n < _LANE_DENSE_COLS:
        # Tiny input: single row padded to a multiple of 128 lanes; the block
        # equals the full (1, cols) array, which satisfies the tiling rule.
        cols = _round_up(max(n, 1), _LANE)
        tr, rows = 1, 1
    else:
        cols = _LANE_DENSE_COLS
        rows_raw = -(-n // cols)
        # Largest sublane-aligned row tile under the ~2 MiB block budget.
        max_tr = max(sub, (_TARGET_BLOCK_BYTES // (cols * itemsize)) // sub * sub)
        tr = min(max_tr, _round_up(rows_raw, sub))
        # Pad rows to an exact multiple of tr -> no oversized fallback block.
        rows = _round_up(rows_raw, tr)

    padded = rows * cols
    xp = flat if padded == n else jnp.pad(flat, (0, padded - n))
    x2 = xp.reshape(rows, cols)

    block = (tr, cols)
    grid = (rows // tr,)

    out2 = pl.pallas_call(
        _identity_kernel,
        out_shape=jax.ShapeDtypeStruct((rows, cols), dtype),
        grid=grid,
        in_specs=[pl.BlockSpec(block, lambda i: (i, 0))],
        out_specs=pl.BlockSpec(block, lambda i: (i, 0)),
        # Output aliases the input HBM buffer: halves peak footprint and lets
        # XLA drop the extra allocation when the input is donated.
        input_output_aliases={0: 0},
        compiler_params=pltpu.CompilerParams(
            dimension_semantics=("parallel",),
        ),
    )(x2)

    out_flat = out2.reshape(-1)
    if padded != n:
        out_flat = out_flat[:n]
    return out_flat.reshape(orig_shape)


def hax_forward(x: jax.Array, *, materialize: bool = True) -> jax.Array:
    """Forward pass of `_Hax` (identity).

    materialize=False : the true zero-cost equivalent -- returns `x` unchanged
                        (preferred in production; no kernel, no HBM traffic).
    materialize=True  : routes through the optimized Pallas copy kernel, for
                        the rare case a freshly written / aliased buffer is
                        explicitly needed.  Semantics are identical.
    """
    if not materialize:
        return x
    return _pallas_identity_copy(x)


if __name__ == "__main__":
    key = jax.random.PRNGKey(0)
    # Small NCHW-style input consistent with how _Hax sits inside the conv/
    # transformer stack: batch=2, channels=4, spatial=16x16.
    x = jax.random.normal(key, (2, 4, 16, 16), dtype=jnp.float32)

    y = hax_forward(x)  # exercises the Pallas copy kernel
    y = jax.block_until_ready(y)

    assert y.shape == x.shape, (y.shape, x.shape)
    assert y.dtype == x.dtype, (y.dtype, x.dtype)
    assert bool(jnp.all(y == x)), "identity kernel mismatch"

    # Zero-cost path is also the identity.
    z = hax_forward(x, materialize=False)
    assert z is x

    print("KERNEL_OK")
</pallas_src>

<mosaic_0001>
module attributes {stable_mosaic.version = 11 : i64} {
  func.func @_identity_kernel(%arg0: i32, %arg1: memref<8x1024xf32, #tpu.memory_space<vmem>>, %arg2: memref<8x1024xf32, #tpu.memory_space<vmem>>) attributes {dimension_semantics = [#tpu.dimension_semantics<parallel>], iteration_bounds = array<i64: 1>, scalar_prefetch = 0 : i64, scratch_operands = 0 : i64, tpu.core_type = #tpu.core_type<tc>, window_params = [{transform_indices = @transform_0, window_bounds = array<i64: 8, 1024>}, {transform_indices = @transform_1, window_bounds = array<i64: 8, 1024>}]} {
    %c0 = arith.constant 0 : index
    %c0_0 = arith.constant 0 : index
    %0 = vector.load %arg1[%c0, %c0_0] : memref<8x1024xf32, #tpu.memory_space<vmem>>, vector<8x1024xf32>
    %c0_1 = arith.constant 0 : index
    %c0_2 = arith.constant 0 : index
    %1 = vector.load %arg2[%c0_1, %c0_2] : memref<8x1024xf32, #tpu.memory_space<vmem>>, vector<8x1024xf32>
    tpu.vector_store %arg2[%c0_1, %c0_2], %0 {strides = array<i32>} : memref<8x1024xf32, #tpu.memory_space<vmem>>, vector<8x1024xf32>,
    return
  }
  func.func @transform_0(%arg0: i32) -> (i32, i32) {
    %c0_i32 = arith.constant 0 : i32
    %c0_i32_0 = arith.constant 0 : i32
    return %arg0, %c0_i32 : i32, i32
  }
  func.func @transform_1(%arg0: i32) -> (i32, i32) {
    %c0_i32 = arith.constant 0 : i32
    %c0_i32_0 = arith.constant 0 : i32
    return %arg0, %c0_i32 : i32, i32
  }
}

</mosaic_0001>

<llo_original>
// kernel: tpu_custom_call.1
$region0: #{tpu_custom_call.1}
  #allocation0 [shape = 'u32[]', space=smem, size = 0x4, offset = 0x4, fixed_abs, tag = 'smem constant byte address 0x4 - core index']
  #allocation1 [shape = 'u32[72,128]{1,0:T(1,128)}', space=vmem, size = 0x9000, scoped, tag = 'internal scratch']
  %s0 = inlined_call_operand.hbm [shape: f32[8,1024], index: 0, kind: input, shape index: {}, may-alias: {0,1}]
  %s1 = inlined_call_operand.hbm [shape: f32[8,1024], index: 1, kind: output, shape index: {}, may-alias: {0,1}]
  %s2 = sld [smem:[#allocation0]]
  $region18: #{tpu_custom_call.1} parent=0
    _
  %s4 = ssub.s32 1, %s2
  %s5 = scalar_select 0, %s4, %s2
  $region1: #{tpu_custom_call.1} parent=0
    #allocation2 [shape = 'u8[32768]{0}', space=vmem, size = 0x8000, scoped, tag = 'input window, operand 0, single buffered']
    #allocation3 [shape = 's32[1]{0}', space=sflag, size = 0x4, scoped, tag = 'scoped memory for tpu_custom_call.1']
    #allocation4 [shape = 's32[1]{0}', space=sflag, size = 0x4, scoped, tag = 'scoped memory for tpu_custom_call.1']
    #allocation5 [shape = 'u8[32768]{0}', space=vmem, size = 0x8000, scoped, tag = 'output window, operand 0, single buffered']
    %6 = vsyncpa [#allocation3], 0
    %7 = vsyncpa [#allocation4], 0
    // Predicated region
    $region2: #{tpu_custom_call.1} parent=1 // pred_check
      _
    $region3: #{tpu_custom_call.1} parent=1 // pred_check_branch
      %9 = sbr.rel (0) target = $region5
    $region4: #{tpu_custom_call.1} parent=1 // pred_region
      %11 = vsyncadd [#allocation3], 0
      %s13 = sshll.u32 %s0, 4
      %s14 = int_to_ptr.hbm [resolvable:$true] %s13
      %s15 = sshll.u32 [#allocation2], 4
      %s16 = int_to_ptr.vmem [resolvable:$true] %s15
      %18 = dma.hbm_to_vmem [thread:$0]  %s14, 1024, %s16, [#allocation3]
    $region5: #{tpu_custom_call.1} parent=1 // pred_fallthru
      _
    // Predicated region
    $region6: #{tpu_custom_call.1} parent=1 // pred_check
      _
    $region7: #{tpu_custom_call.1} parent=1 // pred_check_branch
      %20 = sbr.rel (0) target = $region9
    $region8: #{tpu_custom_call.1} parent=1 // pred_region
      %22 = dma.done [#allocation3], 1024
    $region9: #{tpu_custom_call.1} parent=1 // pred_fallthru
      _
    %v23 = vld [vmem:[#allocation2] sm:$0xff]
    %v24 = vld [vmem:[#allocation2 + $0x8] sm:$0xff]
    %v25 = vld [vmem:[#allocation2 + $0x10] sm:$0xff]
    %v26 = vld [vmem:[#allocation2 + $0x18] sm:$0xff]
    %v27 = vld [vmem:[#allocation2 + $0x20] sm:$0xff]
    %v28 = vld [vmem:[#allocation2 + $0x28] sm:$0xff]
    %v29 = vld [vmem:[#allocation2 + $0x30] sm:$0xff]
    %v30 = vld [vmem:[#allocation2 + $0x38] sm:$0xff]
    %31 = vst [vmem:[#allocation5] sm:$0xff] %v23
    %32 = vst [vmem:[#allocation5 + $0x8] sm:$0xff] %v24
    %33 = vst [vmem:[#allocation5 + $0x10] sm:$0xff] %v25
    %34 = vst [vmem:[#allocation5 + $0x18] sm:$0xff] %v26
    %35 = vst [vmem:[#allocation5 + $0x20] sm:$0xff] %v27
    %36 = vst [vmem:[#allocation5 + $0x28] sm:$0xff] %v28
    %37 = vst [vmem:[#allocation5 + $0x30] sm:$0xff] %v29
    %38 = vst [vmem:[#allocation5 + $0x38] sm:$0xff] %v30
    // Predicated region
    $region10: #{tpu_custom_call.1} parent=1 // pred_check
      _
    $region11: #{tpu_custom_call.1} parent=1 // pred_check_branch
      %40 = sbr.rel (0) target = $region13
    $region12: #{tpu_custom_call.1} parent=1 // pred_region
      %42 = vsyncadd [#allocation4], 0
      %s44 = sshll.u32 [#allocation5], 4
      %s45 = int_to_ptr.vmem [resolvable:$true] %s44
      %s46 = sshll.u32 %s1, 4
      %s47 = int_to_ptr.hbm [resolvable:$true] %s46
      %49 = dma.vmem_to_hbm [thread:$0]  %s45, 1024, %s47, [#allocation4]
    $region13: #{tpu_custom_call.1} parent=1 // pred_fallthru
      _
    // Predicated region
    $region14: #{tpu_custom_call.1} parent=1 // pred_check
      _
    $region15: #{tpu_custom_call.1} parent=1 // pred_check_branch
      %51 = sbr.rel (0) target = $region17
    $region16: #{tpu_custom_call.1} parent=1 // pred_region
      %53 = dma.done [#allocation4], 1024
    $region17: #{tpu_custom_call.1} parent=1 // pred_fallthru
      _
    %54 = vsyncpa [#allocation3], 1
    %55 = vsyncpa [#allocation4], 1

</llo_original>
